<compile_context>
chip_gen: v7x
topology: tpu7x:2x2x1
jax: 0.10.0
libtpu: 0.0.40
codegen_flags: <defaults>
</compile_context>

<pallas_src>
import functools
import math

import jax
import jax.numpy as jnp
from jax.experimental import pallas as pl
from jax.experimental.pallas import tpu as pltpu

_NB_CAP = 8  # max batch slices coalesced into one grid step (static unroll)
_TARGET_DTYPES = (jnp.dtype(jnp.int8), jnp.dtype(jnp.int16),
                  jnp.dtype(jnp.int32), jnp.dtype(jnp.uint8))


def _hw_budgets(max_block_bytes=None, vmem_limit_bytes=None):
    """Generation-aware (logits_block_bytes, vmem_limit_bytes)."""
    try:
        vmem_cap = getattr(pltpu.get_tpu_info(), "vmem_capacity_bytes", None)
    except Exception:
        vmem_cap = None
    if vmem_cap is not None and vmem_cap <= 64 * 1024 * 1024:
        # v7x-class (64 MiB VMEM / TC): smaller blocks, tighter scoped limit.
        block, limit = 2 * 1024 * 1024, 40 * 1024 * 1024
    else:
        # v5e / v6e (128 MiB VMEM): 4 MiB blocks already sit at the HBM roofline.
        block, limit = 4 * 1024 * 1024, 64 * 1024 * 1024
    if vmem_cap is not None:
        limit = min(limit, int(vmem_cap * 3 // 4))
    if max_block_bytes is not None:
        block = int(max_block_bytes)
    if vmem_limit_bytes is not None:
        limit = int(vmem_limit_bytes)
    return block, limit


def _canon_targets(y):
    # Narrow integer targets stay in their native dtype (upcast in-kernel) to
    # cut HBM traffic on mem-bound v5e/v6e; anything else becomes int32.
    if y.dtype in _TARGET_DTYPES:
        return y
    return y.astype(jnp.int32)


def _log_softmax(x, axis):
    m = jnp.max(x, axis=axis, keepdims=True)
    return x - (m + jnp.log(jnp.sum(jnp.exp(x - m), axis=axis, keepdims=True)))


def _focal_terms(log_p, y, alpha, gamma, class_axis):
    """Per-position focal loss, class axis reduced with keepdims=True."""
    cls = jax.lax.broadcasted_iota(jnp.int32, log_p.shape, class_axis)
    mask = cls == y                         # bool select, no cast + multiply
    if gamma == 0.0:
        # alpha folded into log_p: single select + single cross-class reduce.
        return -jnp.sum(jnp.where(mask, alpha * log_p, 0.0),
                        axis=class_axis, keepdims=True)
    log_pt = jnp.sum(jnp.where(mask, log_p, 0.0), axis=class_axis, keepdims=True)
    alpha_y = jnp.sum(jnp.where(mask, alpha, 0.0), axis=class_axis, keepdims=True)
    one_m_pt = 1.0 - jnp.exp(log_pt)        # in [0, 1]
    g = float(gamma)
    if g.is_integer() and 1.0 <= g <= 8.0:
        focal = one_m_pt
        for _ in range(int(g) - 1):
            focal = focal * one_m_pt
    else:
        # exp(g*log(x)) on the EUP instead of a generic pow; one_m_pt == 0
        # gives log=-inf -> exp=0, matching 0**g for g > 0.
        focal = jnp.exp(g * jnp.log(one_m_pt))
    return -alpha_y * focal * log_pt


def _write_partials(out_ref, tile_sum, tile_cnt):
    # Pack the two partial scalars into a lane/sublane-aligned (8,128) block:
    # [0,0] = loss-sum, [1,0] = valid-count, rest zeros (unmasked full vst).
    row = jax.lax.broadcasted_iota(jnp.int32, (8, 128), 0)
    col = jax.lax.broadcasted_iota(jnp.int32, (8, 128), 1)
    out_ref[...] = jnp.where((row == 0) & (col == 0), tile_sum,
                             jnp.where((row == 1) & (col == 0), tile_cnt, 0.0))


def _focal_kernel_cfirst(x_ref, y_ref, alpha_ref, out_ref, *,
                         gamma, ignore_index, s_total):
    """Channels-first layout: block (nb, C, T); classes on sublanes, T on lanes."""
    nb, _, t = x_ref.shape
    s_idx = pl.program_id(1)
    alpha = alpha_ref[...]                                        # (C, 1) f32
    lane = jax.lax.broadcasted_iota(jnp.int32, (1, t), 1)
    pos_ok = (s_idx * t + lane) < s_total                         # ragged tail

    tile_sum = jnp.float32(0.0)
    tile_cnt = jnp.float32(0.0)
    for i in range(nb):                      # static unroll; nb <= _NB_CAP
        x = x_ref[i].astype(jnp.float32)                          # (C, T)
        y = y_ref[i].astype(jnp.int32)                            # (1, T)
        log_p = _log_softmax(x, axis=0)
        loss = _focal_terms(log_p, y, alpha, gamma, 0)            # (1, T)
        valid = (y != ignore_index) & pos_ok
        loss = jnp.where(valid, loss, 0.0)   # mask AFTER the class reduce
        tile_sum = tile_sum + jnp.sum(loss)
        tile_cnt = tile_cnt + jnp.sum(valid.astype(jnp.float32))
    _write_partials(out_ref, tile_sum, tile_cnt)


def _focal_kernel_clast(x_ref, y_ref, alpha_ref, out_ref, *,
                        gamma, ignore_index, n_total):
    """Native (N, C) layout: rows on sublanes, classes on lanes (no transpose)."""
    tn, _ = x_ref.shape
    n_idx = pl.program_id(0)
    x = x_ref[...].astype(jnp.float32)                            # (Tn, C)
    y = y_ref[...].astype(jnp.int32)                              # (Tn, 1)
    alpha = alpha_ref[...]                                        # (1, C)
    log_p = _log_softmax(x, axis=1)
    loss = _focal_terms(log_p, y, alpha, gamma, 1)                # (Tn, 1)
    row = jax.lax.broadcasted_iota(jnp.int32, (tn, 1), 0)
    valid = (y != ignore_index) & ((n_idx * tn + row) < n_total)
    loss = jnp.where(valid, loss, 0.0)
    _write_partials(out_ref, jnp.sum(loss), jnp.sum(valid.astype(jnp.float32)))


def _partial_sums_cfirst(x, y, alpha, *, gamma, ignore_index,
                         block_bytes, vmem_limit):
    b, c = int(x.shape[0]), int(x.shape[1])
    s = int(math.prod(x.shape[2:]))
    x3 = x.reshape(b, c, s)              # same memory layout, no data movement
    y3 = _canon_targets(y.reshape(b, 1, s))
    elt = jnp.dtype(x.dtype).itemsize

    # Logits block: lane dim a multiple of 128 (or full S), clamped so 2x
    # double-buffers + f32 upcast temporaries fit inside the VMEM limit.
    budget = max(c * 128 * elt, min(block_bytes, vmem_limit // 10))
    max_tile = max(128, (budget // (c * elt)) // 128 * 128)
    # TODO(synk): for extreme C (c*128*elt >> budget) a classes-on-lanes variant
    # would be needed to keep the block within the VMEM budget.
    tile_s = s if s <= max_tile else max_tile
    n_s = pl.cdiv(s, tile_s)

    # Coalesce small per-batch slices: nb slices per grid step (nb divides B,
    # so there are never ragged batch tiles), amortizing the fixed step cost.
    nb = 1
    if n_s == 1 and b > 1:
        slice_bytes = c * s * elt
        for d in range(min(b, _NB_CAP), 0, -1):
            if b % d == 0 and d * slice_bytes <= budget:
                nb = d
                break

    # Keep >= 2 parallel grid steps when there is enough data to matter (v7x
    # shards 'parallel' grid axes across its two TensorCores).
    total_bytes = b * c * s * elt
    if (b // nb) * n_s == 1 and total_bytes > (1 << 20):
        if s > 128:
            tile_s = pl.cdiv(pl.cdiv(s, 2), 128) * 128
            n_s = pl.cdiv(s, tile_s)
        elif nb > 1:
            nb = max(d for d in range(1, nb) if b % d == 0)

    kernel = functools.partial(_focal_kernel_cfirst, gamma=float(gamma),
                               ignore_index=int(ignore_index), s_total=s)
    n_b = b // nb
    partials = pl.pallas_call(
        kernel,
        out_shape=jax.ShapeDtypeStruct((n_b, n_s, 8, 128), jnp.float32),
        grid_spec=pltpu.PrefetchScalarGridSpec(
            num_scalar_prefetch=0,
            grid=(n_b, n_s),
            in_specs=[
                # logits: C on sublanes, spatial on lanes, native dtype
                pl.BlockSpec((nb, c, tile_s), lambda bi, si: (bi, 0, si)),
                # targets: lane-dense, native (possibly narrow) integer dtype
                pl.BlockSpec((nb, 1, tile_s), lambda bi, si: (bi, 0, si)),
                # alpha: tiny, resident
                pl.BlockSpec((c, 1), lambda bi, si: (0, 0)),
            ],
            # per-step partial block -> no cross-step accumulator dependence
            out_specs=pl.BlockSpec((None, None, 8, 128),
                                   lambda bi, si: (bi, si, 0, 0)),
        ),
        compiler_params=pltpu.CompilerParams(
            dimension_semantics=("parallel", "parallel"),
            vmem_limit_bytes=vmem_limit,
        ),
    )(x3, y3, alpha.reshape(c, 1))
    return jnp.sum(partials[:, :, 0, 0]), jnp.sum(partials[:, :, 1, 0])


def _partial_sums_clast(x, y, alpha, *, gamma, ignore_index,
                        block_bytes, vmem_limit):
    n, c = int(x.shape[0]), int(x.shape[1])
    y2 = _canon_targets(y.reshape(n, 1))
    elt = jnp.dtype(x.dtype).itemsize

    budget = max(8 * c * elt, min(block_bytes, vmem_limit // 10))
    max_tile = max(8, (budget // (c * elt)) // 8 * 8)
    tile_n = n if n <= max_tile else max_tile
    n_t = pl.cdiv(n, tile_n)

    total_bytes = n * c * elt
    if n_t == 1 and total_bytes > (1 << 20) and n > 8:
        tile_n = pl.cdiv(pl.cdiv(n, 2), 8) * 8
        n_t = pl.cdiv(n, tile_n)

    kernel = functools.partial(_focal_kernel_clast, gamma=float(gamma),
                               ignore_index=int(ignore_index), n_total=n)
    partials = pl.pallas_call(
        kernel,
        out_shape=jax.ShapeDtypeStruct((n_t, 8, 128), jnp.float32),
        grid_spec=pltpu.PrefetchScalarGridSpec(
            num_scalar_prefetch=0,
            grid=(n_t,),
            in_specs=[
                # logits consumed in native (N, C) layout -> no wrapper transpose
                pl.BlockSpec((tile_n, c), lambda ni: (ni, 0)),
                pl.BlockSpec((tile_n, 1), lambda ni: (ni, 0)),
                pl.BlockSpec((1, c), lambda ni: (0, 0)),
            ],
            out_specs=pl.BlockSpec((None, 8, 128), lambda ni: (ni, 0, 0)),
        ),
        compiler_params=pltpu.CompilerParams(
            dimension_semantics=("parallel",),
            vmem_limit_bytes=vmem_limit,
        ),
    )(x, y2, alpha.reshape(1, c))
    return jnp.sum(partials[:, 0, 0]), jnp.sum(partials[:, 1, 0])


def focal_loss(x, y, alpha, *, gamma=0.0, ignore_index=-100, reduction="mean",
               max_block_bytes=None, vmem_limit_bytes=None):
    """Focal-loss forward.  x: (B, C) or (B, C, d1..dK); y: (B,) or (B, d1..dK)."""
    if reduction not in ("mean", "sum"):
        # TODO(synk): reduction='none' in torch returns only the unignored rows
        # (a dynamic shape); not cleanly expressible with static Pallas outputs.
        raise ValueError("only 'mean' and 'sum' reductions are implemented")
    block_bytes, vmem_limit = _hw_budgets(max_block_bytes, vmem_limit_bytes)
    c = int(x.shape[1])
    alpha_f32 = jnp.asarray(alpha, dtype=jnp.float32).reshape(c)
    if x.ndim > 2:
        total, count = _partial_sums_cfirst(
            x, y, alpha_f32, gamma=gamma, ignore_index=ignore_index,
            block_bytes=block_bytes, vmem_limit=vmem_limit)
    else:
        total, count = _partial_sums_clast(
            x, y, alpha_f32, gamma=gamma, ignore_index=ignore_index,
            block_bytes=block_bytes, vmem_limit=vmem_limit)
    if reduction == "mean":
        # torch returns 0.0 when every position is ignored
        return jnp.where(count > 0, total / jnp.maximum(count, 1.0), 0.0)
    return total


def focal_loss_ref(x, y, alpha, *, gamma, ignore_index, reduction="mean"):
    """Pure-JAX reference mirroring the PyTorch forward."""
    c = x.shape[1]
    if x.ndim > 2:
        perm = (0,) + tuple(range(2, x.ndim)) + (1,)
        x = jnp.transpose(x, perm).reshape(-1, c)
        y = y.reshape(-1)
    valid = y != ignore_index
    log_p = jax.nn.log_softmax(x.astype(jnp.float32), axis=-1)
    ysafe = jnp.where(valid, y, 0).astype(jnp.int32)
    log_pt = jnp.take_along_axis(log_p, ysafe[:, None], axis=-1)[:, 0]
    ce = -alpha[ysafe] * log_pt
    pt = jnp.exp(log_pt)
    loss = (1.0 - pt) ** gamma * ce
    loss = jnp.where(valid, loss, 0.0)
    if reduction == "sum":
        return jnp.sum(loss)
    denom = jnp.sum(valid.astype(jnp.float32))
    return jnp.where(denom > 0, jnp.sum(loss) / jnp.maximum(denom, 1.0), 0.0)


if __name__ == "__main__":
    key = jax.random.PRNGKey(0)
    kx, ky, km, kx2, ky2, kx3, ky3, kx4, ky4 = jax.random.split(key, 9)

    C = 4
    ignore_index = -100
    alpha = jnp.array([0.25, 0.5, 0.75, 1.0], dtype=jnp.float32)

    # --- check 1: NCHW logits, gamma=2, ignored labels, narrow int16 targets ---
    B, H, W = 2, 16, 16
    x = jax.random.normal(kx, (B, C, H, W), dtype=jnp.float32)
    y = jax.random.randint(ky, (B, H, W), 0, C, dtype=jnp.int32)
    ign = jax.random.uniform(km, (B, H, W)) < 0.1
    y = jnp.where(ign, ignore_index, y).astype(jnp.int16)
    out = focal_loss(x, y, alpha, gamma=2.0, ignore_index=ignore_index)
    out = jax.block_until_ready(out)
    ref = focal_loss_ref(x, y, alpha, gamma=2.0, ignore_index=ignore_index)
    assert jnp.allclose(out, ref, rtol=1e-5, atol=1e-5), (out, ref)

    # --- check 2: plain (N, C) inputs (no wrapper transpose), gamma=0 path ---
    x2 = jax.random.normal(kx2, (16, C), dtype=jnp.float32)
    y2 = jax.random.randint(ky2, (16,), 0, C, dtype=jnp.int32)
    y2 = y2.at[0].set(ignore_index)
    out2 = focal_loss(x2, y2, alpha, gamma=0.0, ignore_index=ignore_index)
    out2 = jax.block_until_ready(out2)
    ref2 = focal_loss_ref(x2, y2, alpha, gamma=0.0, ignore_index=ignore_index)
    assert jnp.allclose(out2, ref2, rtol=1e-5, atol=1e-5), (out2, ref2)

    # --- check 3: ragged spatial tiles (forced small block), odd C ---
    alpha3 = jnp.array([1.0, 0.5, 2.0], dtype=jnp.float32)
    x3 = jax.random.normal(kx3, (1, 3, 7, 23), dtype=jnp.float32)
    y3 = jax.random.randint(ky3, (1, 7, 23), 0, 3, dtype=jnp.int32)
    out3 = focal_loss(x3, y3, alpha3, gamma=2.0, ignore_index=ignore_index,
                      max_block_bytes=2048)           # tile_s=128 + ragged tail
    out3 = jax.block_until_ready(out3)
    ref3 = focal_loss_ref(x3, y3, alpha3, gamma=2.0, ignore_index=ignore_index)
    assert jnp.allclose(out3, ref3, rtol=1e-5, atol=1e-5), (out3, ref3)

    # --- check 4: ragged (N, C) tiles, non-integer gamma, sum reduction ---
    alpha4 = jnp.linspace(0.2, 1.0, 5).astype(jnp.float32)
    x4 = jax.random.normal(kx4, (19, 5), dtype=jnp.float32)
    y4 = jax.random.randint(ky4, (19,), 0, 5, dtype=jnp.int32)
    y4 = y4.at[3].set(ignore_index)
    out4 = focal_loss(x4, y4, alpha4, gamma=1.5, ignore_index=ignore_index,
                      reduction="sum", max_block_bytes=256)  # tile_n=8, ragged
    out4 = jax.block_until_ready(out4)
    ref4 = focal_loss_ref(x4, y4, alpha4, gamma=1.5, ignore_index=ignore_index,
                          reduction="sum")
    assert jnp.allclose(out4, ref4, rtol=1e-5, atol=1e-5), (out4, ref4)

    print("KERNEL_OK")
</pallas_src>

<mosaic_0001>
module attributes {stable_mosaic.version = 11 : i64} {
  func.func @_focal_kernel_cfirst(%arg0: i32, %arg1: i32, %arg2: memref<2x4x256xf32, #tpu.memory_space<vmem>>, %arg3: memref<2x1x256xi16, #tpu.memory_space<vmem>>, %arg4: memref<4x1xf32, #tpu.memory_space<vmem>>, %arg5: memref<1x1x8x128xf32, #tpu.memory_space<vmem>>) attributes {dimension_semantics = [#tpu.dimension_semantics<parallel>, #tpu.dimension_semantics<parallel>], iteration_bounds = array<i64: 1, 1>, scalar_prefetch = 0 : i64, scratch_operands = 0 : i64, tpu.core_type = #tpu.core_type<tc>, window_params = [{transform_indices = @transform_0, window_bounds = array<i64: 2, 4, 256>}, {transform_indices = @transform_1, window_bounds = array<i64: 2, 1, 256>}, {pipeline_mode = #tpu.pipeline_mode<synchronous>, transform_indices = @transform_2, window_bounds = array<i64: 4, 1>}, {transform_indices = @transform_3, window_bounds = array<i64: 1, 1, 8, 128>}]} {
    %c0 = arith.constant 0 : index
    %c0_0 = arith.constant 0 : index
    %0 = vector.load %arg4[%c0, %c0_0] : memref<4x1xf32, #tpu.memory_space<vmem>>, vector<4x1xf32>
    %1 = tpu.iota {dimensions = array<i32: 1>} : vector<1x256xi32>
    %c256_i32 = arith.constant 256 : i32
    %2 = arith.muli %arg1, %c256_i32 : i32
    %3 = vector.broadcast %2 : i32 to vector<1x256xi32>
    %4 = arith.addi %3, %1 : vector<1x256xi32>
    %c256_i32_1 = arith.constant 256 : i32
    %5 = vector.broadcast %c256_i32_1 : i32 to vector<1x256xi32>
    %6 = arith.cmpi slt, %4, %5 : vector<1x256xi32>
    %c0_2 = arith.constant 0 : index
    %c0_3 = arith.constant 0 : index
    %c0_4 = arith.constant 0 : index
    %7 = vector.load %arg2[%c0_2, %c0_3, %c0_4] : memref<2x4x256xf32, #tpu.memory_space<vmem>>, vector<1x4x256xf32>
    %8 = vector.shape_cast %7 : vector<1x4x256xf32> to vector<4x256xf32>
    %c0_5 = arith.constant 0 : index
    %c0_6 = arith.constant 0 : index
    %c0_7 = arith.constant 0 : index
    %9 = vector.load %arg3[%c0_5, %c0_6, %c0_7] : memref<2x1x256xi16, #tpu.memory_space<vmem>>, vector<1x1x256xi16>
    %10 = vector.shape_cast %9 : vector<1x1x256xi16> to vector<1x256xi16>
    %11 = arith.extsi %10 : vector<1x256xi16> to vector<1x256xi32>
    %cst = arith.constant dense<0xFF800000> : vector<256xf32>
    %12 = vector.multi_reduction <maximumf>, %8, %cst [0] : vector<4x256xf32> to vector<256xf32>
    %13 = vector.shape_cast %12 : vector<256xf32> to vector<1x256xf32>
    %14 = vector.broadcast %13 : vector<1x256xf32> to vector<4x256xf32>
    %15 = arith.subf %8, %14 : vector<4x256xf32>
    %16 = math.exp %15 : vector<4x256xf32>
    %cst_8 = arith.constant dense<0.000000e+00> : vector<256xf32>
    %17 = vector.multi_reduction <add>, %16, %cst_8 [0] : vector<4x256xf32> to vector<256xf32>
    %18 = vector.shape_cast %17 : vector<256xf32> to vector<1x256xf32>
    %19 = math.log %18 : vector<1x256xf32>
    %20 = arith.addf %13, %19 : vector<1x256xf32>
    %21 = vector.broadcast %20 : vector<1x256xf32> to vector<4x256xf32>
    %22 = arith.subf %8, %21 : vector<4x256xf32>
    %23 = tpu.iota {dimensions = array<i32: 0>} : vector<4x256xi32>
    %24 = vector.broadcast %11 : vector<1x256xi32> to vector<4x256xi32>
    %25 = arith.cmpi eq, %23, %24 : vector<4x256xi32>
    %cst_9 = arith.constant 0.000000e+00 : f32
    %26 = vector.broadcast %cst_9 : f32 to vector<4x256xf32>
    %27 = arith.select %25, %22, %26 : vector<4x256xi1>, vector<4x256xf32>
    %cst_10 = arith.constant dense<0.000000e+00> : vector<256xf32>
    %28 = vector.multi_reduction <add>, %27, %cst_10 [0] : vector<4x256xf32> to vector<256xf32>
    %29 = vector.shape_cast %28 : vector<256xf32> to vector<1x256xf32>
    %cst_11 = arith.constant 0.000000e+00 : f32
    %30 = vector.shape_cast %0 : vector<4x1xf32> to vector<4x1xf32>
    %31 = vector.broadcast %30 : vector<4x1xf32> to vector<4x256xf32>
    %32 = vector.broadcast %cst_11 : f32 to vector<4x256xf32>
    %33 = arith.select %25, %31, %32 : vector<4x256xi1>, vector<4x256xf32>
    %cst_12 = arith.constant dense<0.000000e+00> : vector<256xf32>
    %34 = vector.multi_reduction <add>, %33, %cst_12 [0] : vector<4x256xf32> to vector<256xf32>
    %35 = vector.shape_cast %34 : vector<256xf32> to vector<1x256xf32>
    %36 = math.exp %29 : vector<1x256xf32>
    %cst_13 = arith.constant 1.000000e+00 : f32
    %37 = vector.broadcast %cst_13 : f32 to vector<1x256xf32>
    %38 = arith.subf %37, %36 : vector<1x256xf32>
    %39 = arith.mulf %38, %38 : vector<1x256xf32>
    %cst_14 = arith.constant 0.000000e+00 : f32
    %40 = vector.broadcast %cst_14 : f32 to vector<1x256xf32>
    %41 = arith.subf %40, %35 : vector<1x256xf32>
    %42 = arith.mulf %41, %39 : vector<1x256xf32>
    %43 = arith.mulf %42, %29 : vector<1x256xf32>
    %c-100_i32 = arith.constant -100 : i32
    %44 = vector.broadcast %c-100_i32 : i32 to vector<1x256xi32>
    %45 = arith.cmpi ne, %11, %44 : vector<1x256xi32>
    %46 = arith.andi %45, %6 : vector<1x256xi1>
    %cst_15 = arith.constant 0.000000e+00 : f32
    %47 = vector.broadcast %cst_15 : f32 to vector<1x256xf32>
    %48 = arith.select %46, %43, %47 : vector<1x256xi1>, vector<1x256xf32>
    %49 = vector.shape_cast %48 : vector<1x256xf32> to vector<1x1x256xf32>
    %cst_16 = arith.constant dense<0.000000e+00> : vector<1xf32>
    %50 = vector.multi_reduction <add>, %49, %cst_16 [1, 2] : vector<1x1x256xf32> to vector<1xf32>
    %51 = vector.shape_cast %50 : vector<1xf32> to vector<1x1x1xf32>
    %52 = vector.extract %51[0, 0, 0] : f32 from vector<1x1x1xf32>
    %cst_17 = arith.constant 0.000000e+00 : f32
    %53 = arith.addf %cst_17, %52 : f32
    %54 = arith.extui %46 : vector<1x256xi1> to vector<1x256xi32>
    %55 = arith.sitofp %54 : vector<1x256xi32> to vector<1x256xf32>
    %56 = vector.shape_cast %55 : vector<1x256xf32> to vector<1x1x256xf32>
    %cst_18 = arith.constant dense<0.000000e+00> : vector<1xf32>
    %57 = vector.multi_reduction <add>, %56, %cst_18 [1, 2] : vector<1x1x256xf32> to vector<1xf32>
    %58 = vector.shape_cast %57 : vector<1xf32> to vector<1x1x1xf32>
    %59 = vector.extract %58[0, 0, 0] : f32 from vector<1x1x1xf32>
    %cst_19 = arith.constant 0.000000e+00 : f32
    %60 = arith.addf %cst_19, %59 : f32
    %c1 = arith.constant 1 : index
    %c0_20 = arith.constant 0 : index
    %c0_21 = arith.constant 0 : index
    %61 = vector.load %arg2[%c1, %c0_20, %c0_21] : memref<2x4x256xf32, #tpu.memory_space<vmem>>, vector<1x4x256xf32>
    %62 = vector.shape_cast %61 : vector<1x4x256xf32> to vector<4x256xf32>
    %c1_22 = arith.constant 1 : index
    %c0_23 = arith.constant 0 : index
    %c0_24 = arith.constant 0 : index
    %63 = vector.load %arg3[%c1_22, %c0_23, %c0_24] : memref<2x1x256xi16, #tpu.memory_space<vmem>>, vector<1x1x256xi16>
    %64 = vector.shape_cast %63 : vector<1x1x256xi16> to vector<1x256xi16>
    %65 = arith.extsi %64 : vector<1x256xi16> to vector<1x256xi32>
    %cst_25 = arith.constant dense<0xFF800000> : vector<256xf32>
    %66 = vector.multi_reduction <maximumf>, %62, %cst_25 [0] : vector<4x256xf32> to vector<256xf32>
    %67 = vector.shape_cast %66 : vector<256xf32> to vector<1x256xf32>
    %68 = vector.broadcast %67 : vector<1x256xf32> to vector<4x256xf32>
    %69 = arith.subf %62, %68 : vector<4x256xf32>
    %70 = math.exp %69 : vector<4x256xf32>
    %cst_26 = arith.constant dense<0.000000e+00> : vector<256xf32>
    %71 = vector.multi_reduction <add>, %70, %cst_26 [0] : vector<4x256xf32> to vector<256xf32>
    %72 = vector.shape_cast %71 : vector<256xf32> to vector<1x256xf32>
    %73 = math.log %72 : vector<1x256xf32>
    %74 = arith.addf %67, %73 : vector<1x256xf32>
    %75 = vector.broadcast %74 : vector<1x256xf32> to vector<4x256xf32>
    %76 = arith.subf %62, %75 : vector<4x256xf32>
    %77 = tpu.iota {dimensions = array<i32: 0>} : vector<4x256xi32>
    %78 = vector.broadcast %65 : vector<1x256xi32> to vector<4x256xi32>
    %79 = arith.cmpi eq, %77, %78 : vector<4x256xi32>
    %cst_27 = arith.constant 0.000000e+00 : f32
    %80 = vector.broadcast %cst_27 : f32 to vector<4x256xf32>
    %81 = arith.select %79, %76, %80 : vector<4x256xi1>, vector<4x256xf32>
    %cst_28 = arith.constant dense<0.000000e+00> : vector<256xf32>
    %82 = vector.multi_reduction <add>, %81, %cst_28 [0] : vector<4x256xf32> to vector<256xf32>
    %83 = vector.shape_cast %82 : vector<256xf32> to vector<1x256xf32>
    %cst_29 = arith.constant 0.000000e+00 : f32
    %84 = vector.shape_cast %0 : vector<4x1xf32> to vector<4x1xf32>
    %85 = vector.broadcast %84 : vector<4x1xf32> to vector<4x256xf32>
    %86 = vector.broadcast %cst_29 : f32 to vector<4x256xf32>
    %87 = arith.select %79, %85, %86 : vector<4x256xi1>, vector<4x256xf32>
    %cst_30 = arith.constant dense<0.000000e+00> : vector<256xf32>
    %88 = vector.multi_reduction <add>, %87, %cst_30 [0] : vector<4x256xf32> to vector<256xf32>
    %89 = vector.shape_cast %88 : vector<256xf32> to vector<1x256xf32>
    %90 = math.exp %83 : vector<1x256xf32>
    %cst_31 = arith.constant 1.000000e+00 : f32
    %91 = vector.broadcast %cst_31 : f32 to vector<1x256xf32>
    %92 = arith.subf %91, %90 : vector<1x256xf32>
    %93 = arith.mulf %92, %92 : vector<1x256xf32>
    %cst_32 = arith.constant 0.000000e+00 : f32
    %94 = vector.broadcast %cst_32 : f32 to vector<1x256xf32>
    %95 = arith.subf %94, %89 : vector<1x256xf32>
    %96 = arith.mulf %95, %93 : vector<1x256xf32>
    %97 = arith.mulf %96, %83 : vector<1x256xf32>
    %c-100_i32_33 = arith.constant -100 : i32
    %98 = vector.broadcast %c-100_i32_33 : i32 to vector<1x256xi32>
    %99 = arith.cmpi ne, %65, %98 : vector<1x256xi32>
    %100 = arith.andi %99, %6 : vector<1x256xi1>
    %cst_34 = arith.constant 0.000000e+00 : f32
    %101 = vector.broadcast %cst_34 : f32 to vector<1x256xf32>
    %102 = arith.select %100, %97, %101 : vector<1x256xi1>, vector<1x256xf32>
    %103 = vector.shape_cast %102 : vector<1x256xf32> to vector<1x1x256xf32>
    %cst_35 = arith.constant dense<0.000000e+00> : vector<1xf32>
    %104 = vector.multi_reduction <add>, %103, %cst_35 [1, 2] : vector<1x1x256xf32> to vector<1xf32>
    %105 = vector.shape_cast %104 : vector<1xf32> to vector<1x1x1xf32>
    %106 = vector.extract %105[0, 0, 0] : f32 from vector<1x1x1xf32>
    %107 = arith.addf %53, %106 : f32
    %108 = arith.extui %100 : vector<1x256xi1> to vector<1x256xi32>
    %109 = arith.sitofp %108 : vector<1x256xi32> to vector<1x256xf32>
    %110 = vector.shape_cast %109 : vector<1x256xf32> to vector<1x1x256xf32>
    %cst_36 = arith.constant dense<0.000000e+00> : vector<1xf32>
    %111 = vector.multi_reduction <add>, %110, %cst_36 [1, 2] : vector<1x1x256xf32> to vector<1xf32>
    %112 = vector.shape_cast %111 : vector<1xf32> to vector<1x1x1xf32>
    %113 = vector.extract %112[0, 0, 0] : f32 from vector<1x1x1xf32>
    %114 = arith.addf %60, %113 : f32
    %115 = tpu.iota {dimensions = array<i32: 0>} : vector<8x128xi32>
    %116 = tpu.iota {dimensions = array<i32: 1>} : vector<8x128xi32>
    %c0_i32 = arith.constant 0 : i32
    %117 = vector.broadcast %c0_i32 : i32 to vector<8x128xi32>
    %118 = arith.cmpi eq, %115, %117 : vector<8x128xi32>
    %c0_i32_37 = arith.constant 0 : i32
    %119 = vector.broadcast %c0_i32_37 : i32 to vector<8x128xi32>
    %120 = arith.cmpi eq, %116, %119 : vector<8x128xi32>
    %121 = arith.andi %118, %120 : vector<8x128xi1>
    %c1_i32 = arith.constant 1 : i32
    %122 = vector.broadcast %c1_i32 : i32 to vector<8x128xi32>
    %123 = arith.cmpi eq, %115, %122 : vector<8x128xi32>
    %c0_i32_38 = arith.constant 0 : i32
    %124 = vector.broadcast %c0_i32_38 : i32 to vector<8x128xi32>
    %125 = arith.cmpi eq, %116, %124 : vector<8x128xi32>
    %126 = arith.andi %123, %125 : vector<8x128xi1>
    %cst_39 = arith.constant 0.000000e+00 : f32
    %127 = vector.broadcast %114 : f32 to vector<8x128xf32>
    %128 = vector.broadcast %cst_39 : f32 to vector<8x128xf32>
    %129 = arith.select %126, %127, %128 : vector<8x128xi1>, vector<8x128xf32>
    %130 = vector.broadcast %107 : f32 to vector<8x128xf32>
    %131 = arith.select %121, %130, %129 : vector<8x128xi1>, vector<8x128xf32>
    %c0_40 = arith.constant 0 : index
    %c0_41 = arith.constant 0 : index
    %c0_42 = arith.constant 0 : index
    %c0_43 = arith.constant 0 : index
    %132 = vector.load %arg5[%c0_40, %c0_41, %c0_42, %c0_43] : memref<1x1x8x128xf32, #tpu.memory_space<vmem>>, vector<1x1x8x128xf32>
    %133 = vector.shape_cast %132 : vector<1x1x8x128xf32> to vector<8x128xf32>
    %134 = vector.shape_cast %131 : vector<8x128xf32> to vector<1x1x8x128xf32>
    tpu.vector_store %arg5[%c0_40, %c0_41, %c0_42, %c0_43], %134 {strides = array<i32>} : memref<1x1x8x128xf32, #tpu.memory_space<vmem>>, vector<1x1x8x128xf32>,
    return
  }
  func.func @transform_0(%arg0: i32, %arg1: i32) -> (i32, i32, i32) {
    %c0_i32 = arith.constant 0 : i32
    %c0_i32_0 = arith.constant 0 : i32
    return %arg0, %c0_i32, %arg1 : i32, i32, i32
  }
  func.func @transform_1(%arg0: i32, %arg1: i32) -> (i32, i32, i32) {
    %c0_i32 = arith.constant 0 : i32
    %c0_i32_0 = arith.constant 0 : i32
    return %arg0, %c0_i32, %arg1 : i32, i32, i32
  }
  func.func @transform_2(%arg0: i32, %arg1: i32) -> (i32, i32) {
    %c0_i32 = arith.constant 0 : i32
    %c0_i32_0 = arith.constant 0 : i32
    %c0_i32_1 = arith.constant 0 : i32
    return %c0_i32, %c0_i32_0 : i32, i32
  }
  func.func @transform_3(%arg0: i32, %arg1: i32) -> (i32, i32, i32, i32) {
    %c0_i32 = arith.constant 0 : i32
    %c0_i32_0 = arith.constant 0 : i32
    %c0_i32_1 = arith.constant 0 : i32
    return %arg0, %arg1, %c0_i32, %c0_i32_0 : i32, i32, i32, i32
  }
}

</mosaic_0001>

<llo_original>
// kernel: tpu_custom_call.1
$region0: #{tpu_custom_call.1}
  #allocation0 [shape = 'u32[]', space=smem, size = 0x4, offset = 0x4, fixed_abs, tag = 'smem constant byte address 0x4 - core index']
  #allocation1 [shape = 'u32[144,128]{1,0:T(1,128)}', space=vmem, size = 0x12000, scoped, tag = 'internal scratch']
  %s0 = inlined_call_operand.hbm [shape: f32[2,4,256], index: 0, kind: input, shape index: {}]
  %s1 = inlined_call_operand.hbm [shape: s16[2,1,256], index: 1, kind: input, shape index: {}]
  %s2 = inlined_call_operand.hbm [shape: f32[4,1], index: 2, kind: input, shape index: {}]
  %s3 = inlined_call_operand.hbm [shape: f32[1,1,8,128], index: 3, kind: output, shape index: {}]
  %s4 = sld [smem:[#allocation0]]
  $region34: #{tpu_custom_call.1} parent=0
    _
  %s6 = ssub.s32 1, %s4
  %s7 = scalar_select 0, %s6, %s4
  $region1: #{tpu_custom_call.1} parent=0
    #allocation2 [shape = 'u8[8192]{0}', space=vmem, size = 0x2000, scoped, tag = 'input window, operand 0, single buffered']
    #allocation3 [shape = 's32[1]{0}', space=sflag, size = 0x4, scoped, tag = 'scoped memory for tpu_custom_call.1']
    #allocation4 [shape = 's32[1]{0}', space=sflag, size = 0x4, scoped, tag = 'scoped memory for tpu_custom_call.1']
    #allocation5 [shape = 'u8[2048]{0}', space=vmem, size = 0x800, scoped, tag = 'input window, operand 1, single buffered']
    #allocation6 [shape = 's32[1]{0}', space=sflag, size = 0x4, scoped, tag = 'scoped memory for tpu_custom_call.1']
    #allocation7 [shape = 'u8[2048]{0}', space=vmem, size = 0x800, scoped, tag = 'input window, operand 2, single buffered']
    #allocation8 [shape = 'u8[4096]{0}', space=vmem, size = 0x1000, scoped, tag = 'output window, operand 0, single buffered']
    %8 = vsyncpa [#allocation3], 0
    %9 = vsyncpa [#allocation6], 0
    %10 = vsyncpa [#allocation4], 0
    // Predicated region
    $region2: #{tpu_custom_call.1} parent=1 // pred_check
      _
    $region3: #{tpu_custom_call.1} parent=1 // pred_check_branch
      %12 = sbr.rel (0) target = $region5
    $region4: #{tpu_custom_call.1} parent=1 // pred_region
      %s14 = ssub.s32 256, 256
      %15 = vsyncadd [#allocation3], %s14
      %s16 = sshll.u32 [#allocation2], 4
      %s17 = int_to_ptr.vmem [resolvable:$true] %s16
      %22 = dma.hbm_to_vmem [thread:$0]  %s0, 256, %s17, [#allocation3], 128, 128, 8
    $region5: #{tpu_custom_call.1} parent=1 // pred_fallthru
      _
    // Predicated region
    $region6: #{tpu_custom_call.1} parent=1 // pred_check
      _
    $region7: #{tpu_custom_call.1} parent=1 // pred_check_branch
      %24 = sbr.rel (0) target = $region9
    $region8: #{tpu_custom_call.1} parent=1 // pred_region
      %s26 = ssub.s32 64, 64
      %27 = vsyncadd [#allocation6], %s26
      %s28 = sshll.u32 [#allocation5], 4
      %s29 = int_to_ptr.vmem [resolvable:$true] %s28
      %34 = dma.hbm_to_vmem [thread:$0]  %s1, 64, %s29, [#allocation6], 32, 32, 2
    $region9: #{tpu_custom_call.1} parent=1 // pred_fallthru
      _
    // Predicated region
    $region10: #{tpu_custom_call.1} parent=1 // pred_check
      _
    $region11: #{tpu_custom_call.1} parent=1 // pred_check_branch
      %36 = sbr.rel (0) target = $region13
    $region12: #{tpu_custom_call.1} parent=1 // pred_region
      %s38 = ssub.s32 64, 64
      %39 = vsyncadd [#allocation6], %s38
      %s41 = sshll.u32 [#allocation7], 4
      %s42 = int_to_ptr.vmem [resolvable:$true] %s41
      %44 = dma.hbm_to_vmem [thread:$0]  %s2, 64, %s42, [#allocation6]
    $region13: #{tpu_custom_call.1} parent=1 // pred_fallthru
      _
    // Predicated region
    $region14: #{tpu_custom_call.1} parent=1 // pred_check
      _
    $region15: #{tpu_custom_call.1} parent=1 // pred_check_branch
      %46 = sbr.rel (0) target = $region17
    $region16: #{tpu_custom_call.1} parent=1 // pred_region
      %47 = dma.done [#allocation3], 256
    $region17: #{tpu_custom_call.1} parent=1 // pred_fallthru
      _
    // Predicated region
    $region18: #{tpu_custom_call.1} parent=1 // pred_check
      _
    $region19: #{tpu_custom_call.1} parent=1 // pred_check_branch
      %49 = sbr.rel (0) target = $region21
    $region20: #{tpu_custom_call.1} parent=1 // pred_region
      %50 = dma.done [#allocation6], 64
    $region21: #{tpu_custom_call.1} parent=1 // pred_fallthru
      _
    // Predicated region
    $region22: #{tpu_custom_call.1} parent=1 // pred_check
      _
    $region23: #{tpu_custom_call.1} parent=1 // pred_check_branch
      %52 = sbr.rel (0) target = $region25
    $region24: #{tpu_custom_call.1} parent=1 // pred_region
      %53 = dma.done [#allocation6], 64
    $region25: #{tpu_custom_call.1} parent=1 // pred_fallthru
      _
    %v54 = vld [vmem:[#allocation7] sm:$0xf]
    %v55 = vlaneseq
    %v56 = vand.u32 %v55, 127
    %v57 = vadd.s32 %v56, 128
    %s58 = smul.u32 0, 256
    %v59 = vstv %s58
    %v60 = vadd.s32 %v59, %v56
    %v61 = vadd.s32 %v59, %v57
    %vm62 = vcmp.lt.s32.totalorder %v60, 256
    %vm63 = vcmp.lt.s32.totalorder %v61, 256
    %v64 = vld [vmem:[#allocation2] sm:$0xff]
    %v65 = vld [vmem:[#allocation5] sm:$0x3]
    %v66 = vunpack.c.l.b16 %v65
    %v68 = vcombine.high %v64, %v64
    %vm70 = vcmask 1043456
    %v71 = vsel %vm70, %v64, -inf
    %v72 = vrot.slane %v71, 4
    %v73 = vmax.f32 %v71, %v72
    %v74 = vrot.slane %v73, 2
    %v75 = vmax.f32 %v73, %v74
    %v76 = vrot.slane %v75, 1
    %v77 = vmax.f32 %v75, %v76
    %v78 = vsel %vm70, %v68, -inf
    %v79 = vrot.slane %v78, 4
    %v80 = vmax.f32 %v78, %v79
    %v81 = vrot.slane %v80, 2
    %v82 = vmax.f32 %v80, %v81
    %v83 = vrot.slane %v82, 1
    %v84 = vmax.f32 %v82, %v83
    %v87 = vcombine.low %v77, %v84
    %v89 = vsub.f32 %v64, %v87
    %v90 = vmul.f32 %v89, 1.442695
    %v91 = vpow.pop %v90
    %v93 = vcombine.high %v91, %v91
    %v95 = vsel %vm70, %v91, 0.0
    %v96 = vrot.slane %v95, 4
    %v97 = vadd.f32 %v95, %v96
    %v98 = vrot.slane %v97, 2
    %v99 = vadd.f32 %v97, %v98
    %v100 = vrot.slane %v99, 1
    %v101 = vadd.f32 %v99, %v100
    %v102 = vsel %vm70, %v93, 0.0
    %v103 = vrot.slane %v102, 4
    %v104 = vadd.f32 %v102, %v103
    %v105 = vrot.slane %v104, 2
    %v106 = vadd.f32 %v104, %v105
    %v107 = vrot.slane %v106, 1
    %v108 = vadd.f32 %v106, %v107
    %v109 = vlog2.pop %v101
    %v110 = vmul.f32 %v109, 0.6931472
    %v111 = vlog2.pop %v108
    %v112 = vmul.f32 %v111, 0.6931472
    %v113 = vadd.f32 %v77, %v110
    %v114 = vadd.f32 %v84, %v112
    %v117 = vcombine.low %v113, %v114
    %v119 = vsub.f32 %v64, %v117
    %v120 = vlaneseq
    %v121 = vshrl.u32 %v120, 7
    %v122 = vlaneseq
    %v123 = vshrl.u32 %v122, 7
    %v124 = vsub.s32 0, %v123
    %v125 = vrot.slane %v66, %v124
    %v126 = vlaneseq
    %v127 = vshrl.u32 %v126, 7
    %v128 = vsub.s32 2, %v127
    %v129 = vrot.slane %v66, %v128
    %v130 = vlaneseq
    %v131 = vshrl.u32 %v130, 7
    %v132 = vsub.s32 0, %v131
    %v133 = vrot.slane %v125, %v132
    %v134 = vlaneseq
    %v135 = vshrl.u32 %v134, 7
    %v136 = vsub.s32 0, %v135
    %v137 = vrot.slane %v129, %v136
    %vm138 = vcmp.eq.s32.totalorder %v121, %v133
    %vm139 = vcmp.eq.s32.totalorder %v121, %v137
    %v141 = vcombine.high %v119, %v119
    %v143 = vsel %vm138, %v119, 0.0
    %v144 = vsel %vm139, %v141, 0.0
    %v145 = vsel %vm70, %v143, 0.0
    %v146 = vrot.slane %v145, 4
    %v147 = vadd.f32 %v145, %v146
    %v148 = vrot.slane %v147, 2
    %v149 = vadd.f32 %v147, %v148
    %v150 = vrot.slane %v149, 1
    %v151 = vadd.f32 %v149, %v150
    %v152 = vsel %vm70, %v144, 0.0
    %v153 = vrot.slane %v152, 4
    %v154 = vadd.f32 %v152, %v153
    %v155 = vrot.slane %v154, 2
    %v156 = vadd.f32 %v154, %v155
    %v157 = vrot.slane %v156, 1
    %v158 = vadd.f32 %v156, %v157
    %160 = vset.pattern.permute.xlu0 0
    %161 = vperm.xlu0 %160, %v54
    %v162 = vpop.permute.xlu0 %161
    %v164 = vsel %vm138, %v162, 0.0
    %v165 = vsel %vm139, %v162, 0.0
    %v166 = vsel %vm70, %v164, 0.0
    %v167 = vrot.slane %v166, 4
    %v168 = vadd.f32 %v166, %v167
    %v169 = vrot.slane %v168, 2
    %v170 = vadd.f32 %v168, %v169
    %v171 = vrot.slane %v170, 1
    %v172 = vadd.f32 %v170, %v171
    %v173 = vsel %vm70, %v165, 0.0
    %v174 = vrot.slane %v173, 4
    %v175 = vadd.f32 %v173, %v174
    %v176 = vrot.slane %v175, 2
    %v177 = vadd.f32 %v175, %v176
    %v178 = vrot.slane %v177, 1
    %v179 = vadd.f32 %v177, %v178
    %v180 = vmul.f32 %v151, 1.442695
    %v181 = vpow.pop %v180
    %v182 = vmul.f32 %v158, 1.442695
    %v183 = vpow.pop %v182
    %v184 = vsub.f32 1.0, %v181
    %v185 = vsub.f32 1.0, %v183
    %v186 = vmul.f32 %v184, %v184
    %v187 = vmul.f32 %v185, %v185
    %v188 = vsub.f32 0.0, %v172
    %v189 = vsub.f32 0.0, %v179
    %v190 = vmul.f32 %v188, %v186
    %v191 = vmul.f32 %v189, %v187
    %v192 = vmul.f32 %v190, %v151
    %v193 = vmul.f32 %v191, %v158
    %vm194 = vcmp.ne.s32.totalorder %v66, 4294967196
    %v195 = vsel %vm62, 1, 0
    %v196 = vsel %vm63, 1, 0
    %v197 = vcombine.low %v195, %v196
    %v199 = vunpack.c.l.s4 1983009808
    %v200 = vunpack.c.0.s8 %v199
    %v201 = vlaneseq
    %v202 = vshrl.u32 %v201, 7
    %v203 = vsub.s32 %v200, %v202
    %v204 = vrot.slane %v197, %v203
    %vm205 = vcmp.ne.s32.totalorder %v204, 0
    %vm206 = vmand %vm194, %vm205
    %v209 = vcombine.low %v192, %v193
    %v211 = vunpack.c.l.s4 1983009808
    %v212 = vunpack.c.0.s8 %v211
    %v213 = vlaneseq
    %v214 = vshrl.u32 %v213, 7
    %v215 = vsub.s32 %v212, %v214
    %v216 = vrot.slane %v209, %v215
    %v218 = vsel %vm206, %v216, 0.0
    %v220 = vlaneseq
    %v221 = vshrl.u32 %v220, 7
    %v222 = vsub.s32 0, %v221
    %v223 = vrot.slane %v218, %v222
    %v224 = vlaneseq
    %v225 = vshrl.u32 %v224, 7
    %v226 = vsub.s32 2, %v225
    %v227 = vrot.slane %v218, %v226
    %vm230 = vcmask 1040384
    %v231 = vsel %vm230, %v223, 0.0
    %v232 = vsel %vm230, %v227, 0.0
    %v233 = vadd.f32 %v231, %v232
    %234 = vadd.xlane.f32.xlu0 %v233
    %v235 = vpop.xlane.xlu0 %234
    %v236 = vrot.slane %v235, 4
    %v237 = vadd.f32 %v235, %v236
    %v238 = vrot.slane %v237, 2
    %v239 = vadd.f32 %v237, %v238
    %v240 = vrot.slane %v239, 1
    %v241 = vadd.f32 %v239, %v240
    %s242 = vtos %v241
    %s243 = sadd.f32 %s242, 0.0
    %v244 = vsel %vm206, 1, 0
    %v245 = vcvt.s32.f32 %v244
    %v247 = vlaneseq
    %v248 = vshrl.u32 %v247, 7
    %v249 = vsub.s32 0, %v248
    %v250 = vrot.slane %v245, %v249
    %v251 = vlaneseq
    %v252 = vshrl.u32 %v251, 7
    %v253 = vsub.s32 2, %v252
    %v254 = vrot.slane %v245, %v253
    %v257 = vsel %vm230, %v250, 0.0
    %v258 = vsel %vm230, %v254, 0.0
    %v259 = vadd.f32 %v257, %v258
    %260 = vadd.xlane.f32.xlu0 %v259
    %v261 = vpop.xlane.xlu0 %260
    %v262 = vrot.slane %v261, 4
    %v263 = vadd.f32 %v261, %v262
    %v264 = vrot.slane %v263, 2
    %v265 = vadd.f32 %v263, %v264
    %v266 = vrot.slane %v265, 1
    %v267 = vadd.f32 %v265, %v266
    %s268 = vtos %v267
    %s269 = sadd.f32 %s268, 0.0
    %s270 = scalar_lea.vmem [#allocation2], 8
    %v271 = vld [vmem:[%s270] sm:$0xff]
    %s272 = scalar_lea.vmem [#allocation5], 2
    %v273 = vld [vmem:[%s272] sm:$0x3]
    %v274 = vunpack.c.l.b16 %v273
    %v276 = vcombine.high %v271, %v271
    %v278 = vsel %vm70, %v271, -inf
    %v279 = vrot.slane %v278, 4
    %v280 = vmax.f32 %v278, %v279
    %v281 = vrot.slane %v280, 2
    %v282 = vmax.f32 %v280, %v281
    %v283 = vrot.slane %v282, 1
    %v284 = vmax.f32 %v282, %v283
    %v285 = vsel %vm70, %v276, -inf
    %v286 = vrot.slane %v285, 4
    %v287 = vmax.f32 %v285, %v286
    %v288 = vrot.slane %v287, 2
    %v289 = vmax.f32 %v287, %v288
    %v290 = vrot.slane %v289, 1
    %v291 = vmax.f32 %v289, %v290
    %v294 = vcombine.low %v284, %v291
    %v296 = vsub.f32 %v271, %v294
    %v297 = vmul.f32 %v296, 1.442695
    %v298 = vpow.pop %v297
    %v300 = vcombine.high %v298, %v298
    %v302 = vsel %vm70, %v298, 0.0
    %v303 = vrot.slane %v302, 4
    %v304 = vadd.f32 %v302, %v303
    %v305 = vrot.slane %v304, 2
    %v306 = vadd.f32 %v304, %v305
    %v307 = vrot.slane %v306, 1
    %v308 = vadd.f32 %v306, %v307
    %v309 = vsel %vm70, %v300, 0.0
    %v310 = vrot.slane %v309, 4
    %v311 = vadd.f32 %v309, %v310
    %v312 = vrot.slane %v311, 2
    %v313 = vadd.f32 %v311, %v312
    %v314 = vrot.slane %v313, 1
    %v315 = vadd.f32 %v313, %v314
    %v316 = vlog2.pop %v308
    %v317 = vmul.f32 %v316, 0.6931472
    %v318 = vlog2.pop %v315
    %v319 = vmul.f32 %v318, 0.6931472
    %v320 = vadd.f32 %v284, %v317
    %v321 = vadd.f32 %v291, %v319
    %v324 = vcombine.low %v320, %v321
    %v326 = vsub.f32 %v271, %v324
    %v327 = vlaneseq
    %v328 = vshrl.u32 %v327, 7
    %v329 = vsub.s32 0, %v328
    %v330 = vrot.slane %v274, %v329
    %v331 = vlaneseq
    %v332 = vshrl.u32 %v331, 7
    %v333 = vsub.s32 2, %v332
    %v334 = vrot.slane %v274, %v333
    %v335 = vlaneseq
    %v336 = vshrl.u32 %v335, 7
    %v337 = vsub.s32 0, %v336
    %v338 = vrot.slane %v330, %v337
    %v339 = vlaneseq
    %v340 = vshrl.u32 %v339, 7
    %v341 = vsub.s32 0, %v340
    %v342 = vrot.slane %v334, %v341
    %vm343 = vcmp.eq.s32.totalorder %v121, %v338
    %vm344 = vcmp.eq.s32.totalorder %v121, %v342
    %v346 = vcombine.high %v326, %v326
    %v348 = vsel %vm343, %v326, 0.0
    %v349 = vsel %vm344, %v346, 0.0
    %v350 = vsel %vm70, %v348, 0.0
    %v351 = vrot.slane %v350, 4
    %v352 = vadd.f32 %v350, %v351
    %v353 = vrot.slane %v352, 2
    %v354 = vadd.f32 %v352, %v353
    %v355 = vrot.slane %v354, 1
    %v356 = vadd.f32 %v354, %v355
    %v357 = vsel %vm70, %v349, 0.0
    %v358 = vrot.slane %v357, 4
    %v359 = vadd.f32 %v357, %v358
    %v360 = vrot.slane %v359, 2
    %v361 = vadd.f32 %v359, %v360
    %v362 = vrot.slane %v361, 1
    %v363 = vadd.f32 %v361, %v362
    %v364 = vsel %vm343, %v162, 0.0
    %v365 = vsel %vm344, %v162, 0.0
    %v366 = vsel %vm70, %v364, 0.0
    %v367 = vrot.slane %v366, 4
    %v368 = vadd.f32 %v366, %v367
    %v369 = vrot.slane %v368, 2
    %v370 = vadd.f32 %v368, %v369
    %v371 = vrot.slane %v370, 1
    %v372 = vadd.f32 %v370, %v371
    %v373 = vsel %vm70, %v365, 0.0
    %v374 = vrot.slane %v373, 4
    %v375 = vadd.f32 %v373, %v374
    %v376 = vrot.slane %v375, 2
    %v377 = vadd.f32 %v375, %v376
    %v378 = vrot.slane %v377, 1
    %v379 = vadd.f32 %v377, %v378
    %v380 = vmul.f32 %v356, 1.442695
    %v381 = vpow.pop %v380
    %v382 = vmul.f32 %v363, 1.442695
    %v383 = vpow.pop %v382
    %v384 = vsub.f32 1.0, %v381
    %v385 = vsub.f32 1.0, %v383
    %v386 = vmul.f32 %v384, %v384
    %v387 = vmul.f32 %v385, %v385
    %v388 = vsub.f32 0.0, %v372
    %v389 = vsub.f32 0.0, %v379
    %v390 = vmul.f32 %v388, %v386
    %v391 = vmul.f32 %v389, %v387
    %v392 = vmul.f32 %v390, %v356
    %v393 = vmul.f32 %v391, %v363
    %vm394 = vcmp.ne.s32.totalorder %v274, 4294967196
    %vm395 = vmand %vm394, %vm205
    %v398 = vcombine.low %v392, %v393
    %v400 = vunpack.c.l.s4 1983009808
    %v401 = vunpack.c.0.s8 %v400
    %v402 = vlaneseq
    %v403 = vshrl.u32 %v402, 7
    %v404 = vsub.s32 %v401, %v403
    %v405 = vrot.slane %v398, %v404
    %v407 = vsel %vm395, %v405, 0.0
    %v409 = vlaneseq
    %v410 = vshrl.u32 %v409, 7
    %v411 = vsub.s32 0, %v410
    %v412 = vrot.slane %v407, %v411
    %v413 = vlaneseq
    %v414 = vshrl.u32 %v413, 7
    %v415 = vsub.s32 2, %v414
    %v416 = vrot.slane %v407, %v415
    %v419 = vsel %vm230, %v412, 0.0
    %v420 = vsel %vm230, %v416, 0.0
    %v421 = vadd.f32 %v419, %v420
    %422 = vadd.xlane.f32.xlu0 %v421
    %v423 = vpop.xlane.xlu0 %422
    %v424 = vrot.slane %v423, 4
    %v425 = vadd.f32 %v423, %v424
    %v426 = vrot.slane %v425, 2
    %v427 = vadd.f32 %v425, %v426
    %v428 = vrot.slane %v427, 1
    %v429 = vadd.f32 %v427, %v428
    %s430 = vtos %v429
    %s431 = sadd.f32 %s243, %s430
    %v432 = vsel %vm395, 1, 0
    %v433 = vcvt.s32.f32 %v432
    %v435 = vlaneseq
    %v436 = vshrl.u32 %v435, 7
    %v437 = vsub.s32 0, %v436
    %v438 = vrot.slane %v433, %v437
    %v439 = vlaneseq
    %v440 = vshrl.u32 %v439, 7
    %v441 = vsub.s32 2, %v440
    %v442 = vrot.slane %v433, %v441
    %v445 = vsel %vm230, %v438, 0.0
    %v446 = vsel %vm230, %v442, 0.0
    %v447 = vadd.f32 %v445, %v446
    %448 = vadd.xlane.f32.xlu0 %v447
    %v449 = vpop.xlane.xlu0 %448
    %v450 = vrot.slane %v449, 4
    %v451 = vadd.f32 %v449, %v450
    %v452 = vrot.slane %v451, 2
    %v453 = vadd.f32 %v451, %v452
    %v454 = vrot.slane %v453, 1
    %v455 = vadd.f32 %v453, %v454
    %s456 = vtos %v455
    %s457 = sadd.f32 %s269, %s456
    %vm458 = vcmp.eq.s32.totalorder %v121, 0
    %vm459 = vcmp.eq.s32.totalorder %v56, 0
    %vm460 = vmand %vm458, %vm459
    %vm461 = vcmp.eq.s32.totalorder %v121, 1
    %vm462 = vmand %vm461, %vm459
    %v463 = vstv %s457
    %v464 = vsel %vm462, %v463, 0.0
    %v465 = vstv %s431
    %v466 = vsel %vm460, %v465, %v464
    %467 = vst [vmem:[#allocation8] sm:$0xff] %v466
    // Predicated region
    $region26: #{tpu_custom_call.1} parent=1 // pred_check
      _
    $region27: #{tpu_custom_call.1} parent=1 // pred_check_branch
      %469 = sbr.rel (0) target = $region29
    $region28: #{tpu_custom_call.1} parent=1 // pred_region
      %s471 = ssub.s32 128, 128
      %472 = vsyncadd [#allocation4], %s471
      %s474 = sshll.u32 [#allocation8], 4
      %s475 = int_to_ptr.vmem [resolvable:$true] %s474
      %477 = dma.vmem_to_hbm [thread:$0]  %s475, 128, %s3, [#allocation4]
    $region29: #{tpu_custom_call.1} parent=1 // pred_fallthru
      _
    // Predicated region
    $region30: #{tpu_custom_call.1} parent=1 // pred_check
      _
    $region31: #{tpu_custom_call.1} parent=1 // pred_check_branch
      %479 = sbr.rel (0) target = $region33
    $region32: #{tpu_custom_call.1} parent=1 // pred_region
      %480 = dma.done [#allocation4], 128
    $region33: #{tpu_custom_call.1} parent=1 // pred_fallthru
      _
    %481 = vsyncpa [#allocation3], 1
    %482 = vsyncpa [#allocation6], 1
    %483 = vsyncpa [#allocation4], 1

</llo_original>
